<compile_context>
chip_gen: v5e
topology: v5e:2x2
jax: 0.10.0
libtpu: 0.0.40
codegen_flags: <defaults>
</compile_context>

<pallas_src>
import functools

import jax
import jax.numpy as jnp
from jax.experimental import pallas as pl
from jax.experimental.pallas import tpu as pltpu


_LANE = 128                            # vreg lane width (last dim)
_MAX_BLOCK_BYTES = 4 * 1024 * 1024     # 4 MiB per block buffer (safe v5e/v6e/v7x)
_VMEM_LIMIT_BYTES = 32 * 1024 * 1024   # 4 double-buffered 4 MiB buffers << 32 MiB


def _round_up(a, b):
    return ((a + b - 1) // b) * b


def _get_activation_fn(name):
    """Mirror of the PyTorch module's getattr(torch, ...) / getattr(F, ...)."""
    if name == "tanh":
        return jnp.tanh
    if name == "sigmoid":
        return jax.nn.sigmoid
    if name == "relu":
        return jax.nn.relu
    if name == "gelu":
        # torch.nn.functional.gelu default is the exact erf formulation.
        # TODO(synk): on v7x exact-erf GELU may flip this kernel EUP/VALU-bound;
        # approximate=True (tanh form) is an option if numerics allow.
        return functools.partial(jax.nn.gelu, approximate=False)
    if name == "silu":
        return jax.nn.silu
    if name == "elu":
        return jax.nn.elu
    if name == "leaky_relu":
        return jax.nn.leaky_relu       # default slope 0.01, matches PyTorch
    if name == "softplus":
        return jax.nn.softplus
    raise ValueError(f"unsupported activation: {name}")


# (flops, transcendentals) per element — advisory scheduling hints only.
_COST_PER_ELEM = {
    "tanh": (1, 1),
    "sigmoid": (2, 1),
    "relu": (1, 0),
    "leaky_relu": (2, 0),
    "gelu": (4, 2),
    "silu": (3, 1),
    "elu": (2, 1),
    "softplus": (2, 2),
}


def _activation_kernel(x_ref, o_ref, *, fn):
    # Pure elementwise VPU/EUP work on a lane-dense (block_rows, 128) tile.
    o_ref[...] = fn(x_ref[...])


def activation_pallas(x, activation="tanh"):
    """Elementwise activation, matching torch `Activation(activation)(x)`."""
    fn = _get_activation_fn(activation)
    orig_shape = x.shape
    dtype = x.dtype
    n = x.size
    itemsize = jnp.dtype(dtype).itemsize
    # Native sublane granularity per dtype: 8 rows f32, 16 bf16, 32 int8/fp8.
    granule = max(8, 32 // itemsize)

    x_flat = x.reshape(-1)
    # Lane-aligned prefix handled by Pallas; the <128-element tail (if any) is
    # handled separately to avoid whole-array pad + slice HBM round trips.
    n_main = (n // _LANE) * _LANE
    if n_main == 0:
        # Input smaller than one vector row — not worth a pallas_call.
        return fn(x_flat).reshape(orig_shape)

    rows = n_main // _LANE
    x2 = (x_flat if n_main == n else x_flat[:n_main]).reshape(rows, _LANE)

    # Block sizing: ~4 MiB per buffer, rounded to the native sublane granule,
    # and >=2 grid steps where possible so v7x uses both TensorCores.
    cap_rows = max(
        granule,
        (_MAX_BLOCK_BYTES // (_LANE * itemsize)) // granule * granule,
    )
    if rows <= granule:
        # Block equals the full array dims (allowed even when < 8 rows).
        block_rows = rows
    else:
        block_rows = min(cap_rows,
                         max(granule, _round_up(pl.cdiv(rows, 2), granule)))
    grid = (pl.cdiv(rows, block_rows),)

    flops_pe, transc_pe = _COST_PER_ELEM.get(activation, (2, 1))
    cost = pl.CostEstimate(
        flops=flops_pe * n_main,
        transcendentals=transc_pe * n_main,
        bytes_accessed=2 * n_main * itemsize,
    )

    out2 = pl.pallas_call(
        functools.partial(_activation_kernel, fn=fn),
        out_shape=jax.ShapeDtypeStruct((rows, _LANE), dtype),
        grid=grid,
        in_specs=[pl.BlockSpec((block_rows, _LANE), lambda i: (i, 0))],
        out_specs=pl.BlockSpec((block_rows, _LANE), lambda i: (i, 0)),
        compiler_params=pltpu.CompilerParams(
            dimension_semantics=("parallel",),
            vmem_limit_bytes=_VMEM_LIMIT_BYTES,
        ),
        cost_estimate=cost,
    )(x2)

    out_flat = out2.reshape(-1)
    if n_main != n:
        # Ragged tail (< 128 elements): compute directly and append.
        out_flat = jnp.concatenate([out_flat, fn(x_flat[n_main:])])
    return out_flat.reshape(orig_shape)


if __name__ == "__main__":
    # Small shapes consistent with the FNO context the module is used in.
    B, C, H, W = 2, 4, 16, 16
    key = jax.random.PRNGKey(0)
    x = jax.random.normal(key, (B, C, H, W), dtype=jnp.float32)

    # Primary path: tanh (explicitly listed in the PyTorch module).
    fwd = jax.jit(functools.partial(activation_pallas, activation="tanh"))
    y = jax.block_until_ready(fwd(x))
    assert y.shape == x.shape and y.dtype == x.dtype
    assert jnp.allclose(y, jnp.tanh(x), rtol=1e-5, atol=1e-5), "tanh mismatch"

    # A few of the F.* activations the module can also wrap.
    checks = [
        ("sigmoid", jax.nn.sigmoid),
        ("relu", jax.nn.relu),
        ("silu", jax.nn.silu),
        ("gelu", functools.partial(jax.nn.gelu, approximate=False)),
    ]
    for name, ref_fn in checks:
        y2 = jax.block_until_ready(
            jax.jit(functools.partial(activation_pallas, activation=name))(x))
        assert jnp.allclose(y2, ref_fn(x), rtol=1e-5, atol=1e-5), f"{name} mismatch"

    # Ragged size: exercises the lane-aligned prefix + tail path (no pad/slice).
    xr = jax.random.normal(jax.random.PRNGKey(1), (2, 3, 47), dtype=jnp.float32)
    yr = jax.block_until_ready(
        jax.jit(functools.partial(activation_pallas, activation="tanh"))(xr))
    assert yr.shape == xr.shape
    assert jnp.allclose(yr, jnp.tanh(xr), rtol=1e-5, atol=1e-5), "ragged mismatch"

    print("KERNEL_OK")
</pallas_src>

<mosaic_0001>
module attributes {stable_mosaic.version = 11 : i64} {
  func.func @_activation_kernel(%arg0: i32, %arg1: memref<8x128xf32, #tpu.memory_space<vmem>>, %arg2: memref<8x128xf32, #tpu.memory_space<vmem>>) attributes {dimension_semantics = [#tpu.dimension_semantics<parallel>], iteration_bounds = array<i64: 2>, scalar_prefetch = 0 : i64, scratch_operands = 0 : i64, tpu.core_type = #tpu.core_type<tc>, window_params = [{transform_indices = @transform_0, window_bounds = array<i64: 8, 128>}, {transform_indices = @transform_1, window_bounds = array<i64: 8, 128>}]} {
    %c0 = arith.constant 0 : index
    %c0_0 = arith.constant 0 : index
    %0 = vector.load %arg1[%c0, %c0_0] : memref<8x128xf32, #tpu.memory_space<vmem>>, vector<8x128xf32>
    %1 = math.tanh %0 : vector<8x128xf32>
    %c0_1 = arith.constant 0 : index
    %c0_2 = arith.constant 0 : index
    %2 = vector.load %arg2[%c0_1, %c0_2] : memref<8x128xf32, #tpu.memory_space<vmem>>, vector<8x128xf32>
    tpu.vector_store %arg2[%c0_1, %c0_2], %1 {strides = array<i32>} : memref<8x128xf32, #tpu.memory_space<vmem>>, vector<8x128xf32>,
    return
  }
  func.func @transform_0(%arg0: i32) -> (i32, i32) {
    %c0_i32 = arith.constant 0 : i32
    %c0_i32_0 = arith.constant 0 : i32
    return %arg0, %c0_i32 : i32, i32
  }
  func.func @transform_1(%arg0: i32) -> (i32, i32) {
    %c0_i32 = arith.constant 0 : i32
    %c0_i32_0 = arith.constant 0 : i32
    return %arg0, %c0_i32 : i32, i32
  }
}

</mosaic_0001>

<llo_original>
// kernel: activation_pallas.1
$region0: #{activation_pallas.1}
  #allocation0 [shape = 'u32[]', space=smem, size = 0x4, offset = 0x4, fixed_abs, tag = 'smem constant byte address 0x4 - core index']
  #allocation1 [shape = 'u32[72,128]{1,0:T(1,128)}', space=vmem, size = 0x9000, scoped, tag = 'internal scratch']
  %s0 = inlined_call_operand.vmem [shape: f32[16,128], index: 0, kind: input, shape index: {}]
  %s1 = inlined_call_operand.vmem [shape: f32[16,128], index: 1, kind: output, shape index: {}]
  %s2 = sld [smem:[#allocation0]]
  $region37: #{activation_pallas.1} parent=0
    _
  %s4 = ssub.s32 1, %s2
  %s5 = scalar_select 0, %s4, %s2
  loop: start=0, step=1, limit=4
  $region2: #{activation_pallas.1} parent=0 // loop_pre_header
    _
  $region3: #{activation_pallas.1} parent=0 // loop_header
    %s7 = sphi 0, %s11
    %p8 = scmp.ge.s32.totalorder %s7, 4
    %s17 = sphi 0, %s19
    %s20 = sphi 0, %s17
    %s21 = sphi 0, %s20
    %s37 = sphi 0, %s21
    %s43 = sphi 0, %s45
    %s46 = sphi 0, %s43
    %s47 = sphi 0, %s46
    %s63 = sphi 0, %s47
  $region4: #{activation_pallas.1} parent=0 // loop_header_branch
    %10 = sbr.rel (%p8) target = $region8
  $region5: #{activation_pallas.1} parent=0 // loop_body
    %s12 = ssub.s32 %s7, 1
    %s13 = ssub.s32 %s7, 2
    %s14 = sadd.s32 %s7, 1
    %s15 = ssub.s32 %s7, %s14
    %p16 = scmp.eq.s32.totalorder %s15, 0
    %s18 = sadd.s32 %s17, 1
    %s19 = scalar_select %p16, %s17, %s18
    %p22 = pneg %p16
    %p23 = scmp.eq.s32.totalorder %s7, 1
    %p24 = por %p22, %p23
    %p25 = scmp.ne.s32.totalorder %s17, %s20
    %p26 = scmp.eq.s32.totalorder %s7, 0
    %p27 = por %p25, %p26
    %p28 = scmp.ne.s32.totalorder %s17, %s20
    %p29 = scmp.eq.s32.totalorder %s12, 1
    %p30 = por %p28, %p29
    %p31 = scmp.ne.s32.totalorder %s20, %s21
    %p32 = scmp.eq.s32.totalorder %s12, 0
    %p33 = por %p31, %p32
    %p34 = scmp.ne.s32.totalorder %s20, %s21
    %p35 = scmp.eq.s32.totalorder %s13, 1
    %p36 = por %p34, %p35
    %p38 = scmp.ne.s32.totalorder %s21, %s37
    %p39 = scmp.eq.s32.totalorder %s13, 0
    %p40 = por %p38, %p39
    %s41 = ssub.s32 %s7, %s14
    %p42 = scmp.eq.s32.totalorder %s41, 0
    %s44 = sadd.s32 %s43, 1
    %s45 = scalar_select %p42, %s43, %s44
    %p48 = pneg %p42
    %p49 = scmp.eq.s32.totalorder %s7, 1
    %p50 = por %p48, %p49
    %p51 = scmp.ne.s32.totalorder %s43, %s46
    %p52 = scmp.eq.s32.totalorder %s7, 0
    %p53 = por %p51, %p52
    %p54 = scmp.ne.s32.totalorder %s43, %s46
    %p55 = scmp.eq.s32.totalorder %s12, 1
    %p56 = por %p54, %p55
    %p57 = scmp.ne.s32.totalorder %s46, %s47
    %p58 = scmp.eq.s32.totalorder %s12, 0
    %p59 = por %p57, %p58
    %p60 = scmp.ne.s32.totalorder %s46, %s47
    %p61 = scmp.eq.s32.totalorder %s13, 1
    %p62 = por %p60, %p61
    %p64 = scmp.ne.s32.totalorder %s47, %s63
    %p65 = scmp.eq.s32.totalorder %s13, 0
    %p66 = por %p64, %p65
    %p67 = scmp.le.s32.totalorder 1, %s7
    %p68 = scmp.lt.s32.totalorder %s7, 3
    %p69 = pnand %p67, %p68
    %p70 = pneg %p69
    // Predicated region
    $region9: #{activation_pallas.1} parent=5 // pred_check
      _
    $region10: #{activation_pallas.1} parent=5 // pred_check_branch
      %72 = sbr.rel (%p69) target = $region12
    $region11: #{activation_pallas.1} parent=5 // pred_region
      %s73 = ssub.s32 %s7, 1
    $region12: #{activation_pallas.1} parent=5 // pred_fallthru
      _
    %p74 = scmp.lt.s32.totalorder %s7, 2
    // Predicated region
    $region13: #{activation_pallas.1} parent=5 // pred_check
      %p75 = pneg %p74
    $region14: #{activation_pallas.1} parent=5 // pred_check_branch
      %77 = sbr.rel (%p75) target = $region16
    $region15: #{activation_pallas.1} parent=5 // pred_region
      // Predicated region
      $region17: #{activation_pallas.1} parent=15 // pred_check
        %p78 = pneg %p27
      $region18: #{activation_pallas.1} parent=15 // pred_check_branch
        %80 = sbr.rel (%p78) target = $region20
      $region19: #{activation_pallas.1} parent=15 // pred_region
        %p81 = scmp.lt.s32.totalorder %s7, 1
        %s82 = scalar_select %p81, %s7, 1
        %s83 = smul.addr %s82, 8
        %s84 = scalar_lea.vmem %s0, %s83
      $region20: #{activation_pallas.1} parent=15 // pred_fallthru
        _
    $region16: #{activation_pallas.1} parent=5 // pred_fallthru
      _
    %p85 = scmp.le.s32.totalorder 1, %s7
    %p86 = scmp.lt.s32.totalorder %s7, 3
    %p87 = pnand %p85, %p86
    %p88 = pneg %p87
    // Predicated region
    $region21: #{activation_pallas.1} parent=5 // pred_check
      _
    $region22: #{activation_pallas.1} parent=5 // pred_check_branch
      %90 = sbr.rel (%p87) target = $region24
    $region23: #{activation_pallas.1} parent=5 // pred_region
      %s91 = ssub.s32 %s7, 1
      %p92 = scmp.lt.s32.totalorder %s12, 1
      %s93 = scalar_select %p92, %s12, 1
      %s94 = smul.addr %s93, 8
      %s95 = scalar_lea.vmem %s0, %s94
      %p96 = pneg %p33
      %p97 = pneg %p30
      %p98 = pneg %p59
      %p99 = pneg %p56
      %p100 = scmp.lt.s32.totalorder %s12, 1
      %s101 = scalar_select %p100, %s12, 1
      %s102 = smul.addr %s101, 8
      %s103 = scalar_lea.vmem %s1, %s102
      %p104 = scmp.lt.s32.totalorder %s12, 1
      %s105 = scalar_select %p104, %s12, 1
      %s106 = smul.addr %s105, 8
      %s107 = scalar_lea.vmem %s0, %s106
      %p108 = scmp.lt.s32.totalorder %s12, 1
      %s109 = scalar_select %p108, %s12, 1
      %s110 = smul.addr %s109, 8
      %s111 = scalar_lea.vmem %s1, %s110
      %v112 = vld [vmem:[%s107] sm:$0xff]
      %v113 = vtanh.pop %v112
      %114 = vst [vmem:[%s111] sm:$0xff] %v113
      %p115 = scmp.lt.s32.totalorder %s12, 1
      %s116 = scalar_select %p115, %s12, 1
      %s117 = smul.addr %s116, 8
      %s118 = scalar_lea.vmem %s1, %s117
      // Predicated region
      $region25: #{activation_pallas.1} parent=23 // pred_check
        %p119 = pneg %p56
      $region26: #{activation_pallas.1} parent=23 // pred_check_branch
        %121 = sbr.rel (%p119) target = $region28
      $region27: #{activation_pallas.1} parent=23 // pred_region
        _
      $region28: #{activation_pallas.1} parent=23 // pred_fallthru
        _
    $region24: #{activation_pallas.1} parent=5 // pred_fallthru
      _
    %p122 = scmp.le.s32.totalorder 2, %s7
    // Predicated region
    $region29: #{activation_pallas.1} parent=5 // pred_check
      %p123 = pneg %p122
    $region30: #{activation_pallas.1} parent=5 // pred_check_branch
      %125 = sbr.rel (%p123) target = $region32
    $region31: #{activation_pallas.1} parent=5 // pred_region
      %s126 = ssub.s32 %s7, 2
      // Predicated region
      $region33: #{activation_pallas.1} parent=31 // pred_check
        %p127 = pneg %p62
      $region34: #{activation_pallas.1} parent=31 // pred_check_branch
        %129 = sbr.rel (%p127) target = $region36
      $region35: #{activation_pallas.1} parent=31 // pred_region
        %p130 = scmp.lt.s32.totalorder %s13, 1
        %s131 = scalar_select %p130, %s13, 1
        %s132 = smul.addr %s131, 8
        %s133 = scalar_lea.vmem %s1, %s132
      $region36: #{activation_pallas.1} parent=31 // pred_fallthru
        _
    $region32: #{activation_pallas.1} parent=5 // pred_fallthru
      _
  $region6: #{activation_pallas.1} parent=0 // loop_footer
    %s11 = sadd.s32 1, %s7
  $region7: #{activation_pallas.1} parent=0 // loop_footer_branch
    %6 = sbr.rel target = $region3
  $region8: #{activation_pallas.1} parent=0 // loop_exit
    _

</llo_original>
